<compile_context>
chip_gen: v6e
topology: v6e:2x2x1
jax: 0.10.0
libtpu: 0.0.40
codegen_flags: <defaults>
</compile_context>

<pallas_src>
import functools

import jax
import jax.numpy as jnp
from jax.experimental import pallas as pl
from jax.experimental.pallas import tpu as pltpu


def _pearson_kernel(pred_ref, true_ref, corr_ref,
                    sp_ref, st_ref, spp_ref, stt_ref, spt_ref,
                    *, n_rows, tile_n, needs_row_mask):
    k = pl.program_id(1)            # position along the N (reduction) axis
    n_k = pl.num_programs(1)

    @pl.when(k == 0)
    def _init():
        sp_ref[...] = jnp.zeros_like(sp_ref)
        st_ref[...] = jnp.zeros_like(st_ref)
        spp_ref[...] = jnp.zeros_like(spp_ref)
        stt_ref[...] = jnp.zeros_like(stt_ref)
        spt_ref[...] = jnp.zeros_like(spt_ref)

    # Accumulate in f32 regardless of input dtype (bf16 inputs stay bf16 in HBM
    # so DMA bytes are not doubled by a wrapper-side cast).
    p = pred_ref[...].astype(jnp.float32)
    t = true_ref[...].astype(jnp.float32)

    if needs_row_mask:
        # Zero out rows past the true N so the partial last tile does not
        # pollute the running sums (the mean divisor below uses the true N).
        rows = jax.lax.broadcasted_iota(jnp.int32, p.shape, 0)
        valid = (k * tile_n + rows) < n_rows
        p = jnp.where(valid, p, 0.0)
        t = jnp.where(valid, t, 0.0)

    # Single-pass running column sums (no dp/dt temporaries).
    sp_ref[...] += jnp.sum(p, axis=0, keepdims=True)
    st_ref[...] += jnp.sum(t, axis=0, keepdims=True)
    spp_ref[...] += jnp.sum(p * p, axis=0, keepdims=True)
    stt_ref[...] += jnp.sum(t * t, axis=0, keepdims=True)
    spt_ref[...] += jnp.sum(p * t, axis=0, keepdims=True)

    @pl.when(k == n_k - 1)
    def _finalize():
        inv_n = jnp.float32(1.0 / n_rows)
        sp = sp_ref[...]
        st = st_ref[...]
        num = spt_ref[...] - sp * st * inv_n
        var_p = spp_ref[...] - sp * sp * inv_n
        var_t = stt_ref[...] - st * st * inv_n
        denom = jnp.sqrt(var_p * var_t)
        # Exact divide kept (epilogue is only F elements, once); eps placement
        # matches the PyTorch reference: num / (sqrt(...) + 1e-8).
        corr_ref[...] = (num / (denom + jnp.float32(1e-8))).astype(corr_ref.dtype)


def pearson_correlation_loss(y_pred: jax.Array, y_true: jax.Array) -> jax.Array:
    assert y_pred.shape == y_true.shape
    assert y_pred.ndim == 2, "expected (N, F) inputs"
    N, F = y_pred.shape

    # Row tile: large enough to hit the HBM roofline, small enough that
    # 2 inputs x 2 pipeline buffers stay well inside scoped VMEM on v5e/v7x.
    tile_n = N if N <= 1024 else 1024
    # Column tile: keep the lane dim a multiple of 128 (or the full F).
    tile_f = F if F <= 512 else 512

    grid = (pl.cdiv(F, tile_f), pl.cdiv(N, tile_n))   # reduction axis last
    needs_row_mask = (N % tile_n) != 0

    kernel = functools.partial(
        _pearson_kernel, n_rows=N, tile_n=tile_n, needs_row_mask=needs_row_mask)

    itemsize = jnp.dtype(y_pred.dtype).itemsize
    cost = pl.CostEstimate(
        flops=6 * N * F,
        transcendentals=2 * F,
        bytes_accessed=2 * N * F * itemsize + 4 * F,
    )

    corr = pl.pallas_call(
        kernel,
        out_shape=jax.ShapeDtypeStruct((1, F), jnp.float32),
        grid_spec=pltpu.PrefetchScalarGridSpec(
            num_scalar_prefetch=0,
            grid=grid,
            in_specs=[
                pl.BlockSpec((tile_n, tile_f), lambda j, k: (k, j)),
                pl.BlockSpec((tile_n, tile_f), lambda j, k: (k, j)),
            ],
            out_specs=pl.BlockSpec((1, tile_f), lambda j, k: (0, j)),
            scratch_shapes=[pltpu.VMEM((1, tile_f), jnp.float32)] * 5,
        ),
        compiler_params=pltpu.CompilerParams(
            dimension_semantics=("parallel", "arbitrary"),
            vmem_limit_bytes=32 * 1024 * 1024,
        ),
        cost_estimate=cost,
    )(y_pred, y_true)

    # loss = 1 - sum_f corr_f  (tiny trailing XLA reduction over F)
    return 1.0 - jnp.sum(corr)


def _reference_loss(y_pred, y_true):
    mean_p = jnp.mean(y_pred, axis=0, keepdims=True)
    mean_t = jnp.mean(y_true, axis=0, keepdims=True)
    num = jnp.sum((y_pred - mean_p) * (y_true - mean_t), axis=0)
    denom = jnp.sqrt(jnp.sum((y_pred - mean_p) ** 2, axis=0) *
                     jnp.sum((y_true - mean_t) ** 2, axis=0))
    corr = num / (denom + 1e-8)
    return 1.0 - jnp.sum(corr)


if __name__ == "__main__":
    key = jax.random.PRNGKey(0)

    # Small case matching the module's forward: 8 samples, 32 feature columns.
    k1, k2 = jax.random.split(key)
    N, F = 8, 32
    y_pred = jax.random.normal(k1, (N, F), dtype=jnp.float32)
    y_true = 0.5 * y_pred + jax.random.normal(k2, (N, F), dtype=jnp.float32)
    loss = pearson_correlation_loss(y_pred, y_true)
    jax.block_until_ready(loss)
    ref = _reference_loss(y_pred, y_true)
    assert jnp.allclose(loss, ref, atol=1e-4, rtol=1e-4), (loss, ref)

    # Larger case exercising the streamed / masked path (N not a multiple of
    # the 1024-row tile, multiple reduction-grid steps).
    k3, k4 = jax.random.split(k2)
    N2, F2 = 1500, 256
    y_pred2 = jax.random.normal(k3, (N2, F2), dtype=jnp.float32)
    y_true2 = 0.5 * y_pred2 + jax.random.normal(k4, (N2, F2), dtype=jnp.float32)
    loss2 = pearson_correlation_loss(y_pred2, y_true2)
    jax.block_until_ready(loss2)
    ref2 = _reference_loss(y_pred2, y_true2)
    assert jnp.allclose(loss2, ref2, atol=1e-3, rtol=1e-3), (loss2, ref2)

    print("KERNEL_OK")
</pallas_src>

<mosaic_0001>
module attributes {stable_mosaic.version = 11 : i64} {
  func.func @_pearson_kernel(%arg0: i32, %arg1: i32, %arg2: memref<8x32xf32, #tpu.memory_space<vmem>>, %arg3: memref<8x32xf32, #tpu.memory_space<vmem>>, %arg4: memref<1x32xf32, #tpu.memory_space<vmem>>, %arg5: memref<1x32xf32, #tpu.memory_space<vmem>>, %arg6: memref<1x32xf32, #tpu.memory_space<vmem>>, %arg7: memref<1x32xf32, #tpu.memory_space<vmem>>, %arg8: memref<1x32xf32, #tpu.memory_space<vmem>>, %arg9: memref<1x32xf32, #tpu.memory_space<vmem>>) attributes {dimension_semantics = [#tpu.dimension_semantics<parallel>, #tpu.dimension_semantics<arbitrary>], iteration_bounds = array<i64: 1, 1>, scalar_prefetch = 0 : i64, scratch_operands = 5 : i64, tpu.core_type = #tpu.core_type<tc>, window_params = [{transform_indices = @transform_0, window_bounds = array<i64: 8, 32>}, {transform_indices = @transform_1, window_bounds = array<i64: 8, 32>}, {transform_indices = @transform_2, window_bounds = array<i64: 1, 32>}]} {
    %c0_i32 = arith.constant 0 : i32
    %0 = arith.cmpi eq, %arg1, %c0_i32 : i32
    %1 = arith.extui %0 : i1 to i32
    %c0_i32_0 = arith.constant 0 : i32
    %2 = arith.cmpi ne, %1, %c0_i32_0 : i32
    scf.if %2 {
      %cst_30 = arith.constant 0.000000e+00 : f32
      %36 = vector.broadcast %cst_30 : f32 to vector<1x32xf32>
      %c0_31 = arith.constant 0 : index
      %c0_32 = arith.constant 0 : index
      %37 = vector.load %arg5[%c0_31, %c0_32] : memref<1x32xf32, #tpu.memory_space<vmem>>, vector<1x32xf32>
      tpu.vector_store %arg5[%c0_31, %c0_32], %36 {strides = array<i32>} : memref<1x32xf32, #tpu.memory_space<vmem>>, vector<1x32xf32>,
      %cst_33 = arith.constant 0.000000e+00 : f32
      %38 = vector.broadcast %cst_33 : f32 to vector<1x32xf32>
      %c0_34 = arith.constant 0 : index
      %c0_35 = arith.constant 0 : index
      %39 = vector.load %arg6[%c0_34, %c0_35] : memref<1x32xf32, #tpu.memory_space<vmem>>, vector<1x32xf32>
      tpu.vector_store %arg6[%c0_34, %c0_35], %38 {strides = array<i32>} : memref<1x32xf32, #tpu.memory_space<vmem>>, vector<1x32xf32>,
      %cst_36 = arith.constant 0.000000e+00 : f32
      %40 = vector.broadcast %cst_36 : f32 to vector<1x32xf32>
      %c0_37 = arith.constant 0 : index
      %c0_38 = arith.constant 0 : index
      %41 = vector.load %arg7[%c0_37, %c0_38] : memref<1x32xf32, #tpu.memory_space<vmem>>, vector<1x32xf32>
      tpu.vector_store %arg7[%c0_37, %c0_38], %40 {strides = array<i32>} : memref<1x32xf32, #tpu.memory_space<vmem>>, vector<1x32xf32>,
      %cst_39 = arith.constant 0.000000e+00 : f32
      %42 = vector.broadcast %cst_39 : f32 to vector<1x32xf32>
      %c0_40 = arith.constant 0 : index
      %c0_41 = arith.constant 0 : index
      %43 = vector.load %arg8[%c0_40, %c0_41] : memref<1x32xf32, #tpu.memory_space<vmem>>, vector<1x32xf32>
      tpu.vector_store %arg8[%c0_40, %c0_41], %42 {strides = array<i32>} : memref<1x32xf32, #tpu.memory_space<vmem>>, vector<1x32xf32>,
      %cst_42 = arith.constant 0.000000e+00 : f32
      %44 = vector.broadcast %cst_42 : f32 to vector<1x32xf32>
      %c0_43 = arith.constant 0 : index
      %c0_44 = arith.constant 0 : index
      %45 = vector.load %arg9[%c0_43, %c0_44] : memref<1x32xf32, #tpu.memory_space<vmem>>, vector<1x32xf32>
      tpu.vector_store %arg9[%c0_43, %c0_44], %44 {strides = array<i32>} : memref<1x32xf32, #tpu.memory_space<vmem>>, vector<1x32xf32>,
    } else {
    }
    %c0 = arith.constant 0 : index
    %c0_1 = arith.constant 0 : index
    %3 = vector.load %arg2[%c0, %c0_1] : memref<8x32xf32, #tpu.memory_space<vmem>>, vector<8x32xf32>
    %c0_2 = arith.constant 0 : index
    %c0_3 = arith.constant 0 : index
    %4 = vector.load %arg3[%c0_2, %c0_3] : memref<8x32xf32, #tpu.memory_space<vmem>>, vector<8x32xf32>
    %c0_4 = arith.constant 0 : index
    %c0_5 = arith.constant 0 : index
    %5 = vector.load %arg5[%c0_4, %c0_5] : memref<1x32xf32, #tpu.memory_space<vmem>>, vector<1x32xf32>
    %cst = arith.constant dense<0.000000e+00> : vector<32xf32>
    %6 = vector.multi_reduction <add>, %3, %cst [0] : vector<8x32xf32> to vector<32xf32>
    %7 = vector.shape_cast %6 : vector<32xf32> to vector<1x32xf32>
    %8 = arith.addf %5, %7 : vector<1x32xf32>
    %c0_6 = arith.constant 0 : index
    %c0_7 = arith.constant 0 : index
    %9 = vector.load %arg5[%c0_6, %c0_7] : memref<1x32xf32, #tpu.memory_space<vmem>>, vector<1x32xf32>
    tpu.vector_store %arg5[%c0_6, %c0_7], %8 {strides = array<i32>} : memref<1x32xf32, #tpu.memory_space<vmem>>, vector<1x32xf32>,
    %c0_8 = arith.constant 0 : index
    %c0_9 = arith.constant 0 : index
    %10 = vector.load %arg6[%c0_8, %c0_9] : memref<1x32xf32, #tpu.memory_space<vmem>>, vector<1x32xf32>
    %cst_10 = arith.constant dense<0.000000e+00> : vector<32xf32>
    %11 = vector.multi_reduction <add>, %4, %cst_10 [0] : vector<8x32xf32> to vector<32xf32>
    %12 = vector.shape_cast %11 : vector<32xf32> to vector<1x32xf32>
    %13 = arith.addf %10, %12 : vector<1x32xf32>
    %c0_11 = arith.constant 0 : index
    %c0_12 = arith.constant 0 : index
    %14 = vector.load %arg6[%c0_11, %c0_12] : memref<1x32xf32, #tpu.memory_space<vmem>>, vector<1x32xf32>
    tpu.vector_store %arg6[%c0_11, %c0_12], %13 {strides = array<i32>} : memref<1x32xf32, #tpu.memory_space<vmem>>, vector<1x32xf32>,
    %c0_13 = arith.constant 0 : index
    %c0_14 = arith.constant 0 : index
    %15 = vector.load %arg7[%c0_13, %c0_14] : memref<1x32xf32, #tpu.memory_space<vmem>>, vector<1x32xf32>
    %16 = arith.mulf %3, %3 : vector<8x32xf32>
    %cst_15 = arith.constant dense<0.000000e+00> : vector<32xf32>
    %17 = vector.multi_reduction <add>, %16, %cst_15 [0] : vector<8x32xf32> to vector<32xf32>
    %18 = vector.shape_cast %17 : vector<32xf32> to vector<1x32xf32>
    %19 = arith.addf %15, %18 : vector<1x32xf32>
    %c0_16 = arith.constant 0 : index
    %c0_17 = arith.constant 0 : index
    %20 = vector.load %arg7[%c0_16, %c0_17] : memref<1x32xf32, #tpu.memory_space<vmem>>, vector<1x32xf32>
    tpu.vector_store %arg7[%c0_16, %c0_17], %19 {strides = array<i32>} : memref<1x32xf32, #tpu.memory_space<vmem>>, vector<1x32xf32>,
    %c0_18 = arith.constant 0 : index
    %c0_19 = arith.constant 0 : index
    %21 = vector.load %arg8[%c0_18, %c0_19] : memref<1x32xf32, #tpu.memory_space<vmem>>, vector<1x32xf32>
    %22 = arith.mulf %4, %4 : vector<8x32xf32>
    %cst_20 = arith.constant dense<0.000000e+00> : vector<32xf32>
    %23 = vector.multi_reduction <add>, %22, %cst_20 [0] : vector<8x32xf32> to vector<32xf32>
    %24 = vector.shape_cast %23 : vector<32xf32> to vector<1x32xf32>
    %25 = arith.addf %21, %24 : vector<1x32xf32>
    %c0_21 = arith.constant 0 : index
    %c0_22 = arith.constant 0 : index
    %26 = vector.load %arg8[%c0_21, %c0_22] : memref<1x32xf32, #tpu.memory_space<vmem>>, vector<1x32xf32>
    tpu.vector_store %arg8[%c0_21, %c0_22], %25 {strides = array<i32>} : memref<1x32xf32, #tpu.memory_space<vmem>>, vector<1x32xf32>,
    %c0_23 = arith.constant 0 : index
    %c0_24 = arith.constant 0 : index
    %27 = vector.load %arg9[%c0_23, %c0_24] : memref<1x32xf32, #tpu.memory_space<vmem>>, vector<1x32xf32>
    %28 = arith.mulf %3, %4 : vector<8x32xf32>
    %cst_25 = arith.constant dense<0.000000e+00> : vector<32xf32>
    %29 = vector.multi_reduction <add>, %28, %cst_25 [0] : vector<8x32xf32> to vector<32xf32>
    %30 = vector.shape_cast %29 : vector<32xf32> to vector<1x32xf32>
    %31 = arith.addf %27, %30 : vector<1x32xf32>
    %c0_26 = arith.constant 0 : index
    %c0_27 = arith.constant 0 : index
    %32 = vector.load %arg9[%c0_26, %c0_27] : memref<1x32xf32, #tpu.memory_space<vmem>>, vector<1x32xf32>
    tpu.vector_store %arg9[%c0_26, %c0_27], %31 {strides = array<i32>} : memref<1x32xf32, #tpu.memory_space<vmem>>, vector<1x32xf32>,
    %c0_i32_28 = arith.constant 0 : i32
    %33 = arith.cmpi eq, %arg1, %c0_i32_28 : i32
    %34 = arith.extui %33 : i1 to i32
    %c0_i32_29 = arith.constant 0 : i32
    %35 = arith.cmpi ne, %34, %c0_i32_29 : i32
    scf.if %35 {
      %c0_30 = arith.constant 0 : index
      %c0_31 = arith.constant 0 : index
      %36 = vector.load %arg5[%c0_30, %c0_31] : memref<1x32xf32, #tpu.memory_space<vmem>>, vector<1x32xf32>
      %c0_32 = arith.constant 0 : index
      %c0_33 = arith.constant 0 : index
      %37 = vector.load %arg6[%c0_32, %c0_33] : memref<1x32xf32, #tpu.memory_space<vmem>>, vector<1x32xf32>
      %c0_34 = arith.constant 0 : index
      %c0_35 = arith.constant 0 : index
      %38 = vector.load %arg9[%c0_34, %c0_35] : memref<1x32xf32, #tpu.memory_space<vmem>>, vector<1x32xf32>
      %39 = arith.mulf %36, %37 : vector<1x32xf32>
      %cst_36 = arith.constant 1.250000e-01 : f32
      %40 = vector.broadcast %cst_36 : f32 to vector<1x32xf32>
      %41 = arith.mulf %39, %40 : vector<1x32xf32>
      %42 = arith.subf %38, %41 : vector<1x32xf32>
      %c0_37 = arith.constant 0 : index
      %c0_38 = arith.constant 0 : index
      %43 = vector.load %arg7[%c0_37, %c0_38] : memref<1x32xf32, #tpu.memory_space<vmem>>, vector<1x32xf32>
      %44 = arith.mulf %36, %36 : vector<1x32xf32>
      %cst_39 = arith.constant 1.250000e-01 : f32
      %45 = vector.broadcast %cst_39 : f32 to vector<1x32xf32>
      %46 = arith.mulf %44, %45 : vector<1x32xf32>
      %47 = arith.subf %43, %46 : vector<1x32xf32>
      %c0_40 = arith.constant 0 : index
      %c0_41 = arith.constant 0 : index
      %48 = vector.load %arg8[%c0_40, %c0_41] : memref<1x32xf32, #tpu.memory_space<vmem>>, vector<1x32xf32>
      %49 = arith.mulf %37, %37 : vector<1x32xf32>
      %cst_42 = arith.constant 1.250000e-01 : f32
      %50 = vector.broadcast %cst_42 : f32 to vector<1x32xf32>
      %51 = arith.mulf %49, %50 : vector<1x32xf32>
      %52 = arith.subf %48, %51 : vector<1x32xf32>
      %53 = arith.mulf %47, %52 : vector<1x32xf32>
      %54 = math.sqrt %53 : vector<1x32xf32>
      %cst_43 = arith.constant 9.99999993E-9 : f32
      %55 = vector.broadcast %cst_43 : f32 to vector<1x32xf32>
      %56 = arith.addf %54, %55 : vector<1x32xf32>
      %57 = arith.divf %42, %56 : vector<1x32xf32>
      %c0_44 = arith.constant 0 : index
      %c0_45 = arith.constant 0 : index
      %58 = vector.load %arg4[%c0_44, %c0_45] : memref<1x32xf32, #tpu.memory_space<vmem>>, vector<1x32xf32>
      tpu.vector_store %arg4[%c0_44, %c0_45], %57 {strides = array<i32>} : memref<1x32xf32, #tpu.memory_space<vmem>>, vector<1x32xf32>,
    } else {
    }
    return
  }
  func.func @transform_0(%arg0: i32, %arg1: i32) -> (i32, i32) {
    %c0_i32 = arith.constant 0 : i32
    return %arg1, %arg0 : i32, i32
  }
  func.func @transform_1(%arg0: i32, %arg1: i32) -> (i32, i32) {
    %c0_i32 = arith.constant 0 : i32
    return %arg1, %arg0 : i32, i32
  }
  func.func @transform_2(%arg0: i32, %arg1: i32) -> (i32, i32) {
    %c0_i32 = arith.constant 0 : i32
    %c0_i32_0 = arith.constant 0 : i32
    return %c0_i32, %arg0 : i32, i32
  }
}

</mosaic_0001>

<llo_original>
// kernel: tpu_custom_call.1
$region0: #{tpu_custom_call.1}
  #allocation0 [shape = 'u32[]', space=smem, size = 0x4, offset = 0x4, fixed_abs, tag = 'smem constant byte address 0x4 - core index']
  #allocation1 [shape = 'u32[144,128]{1,0:T(1,128)}', space=vmem, size = 0x12000, scoped, tag = 'internal scratch']
  #allocation2 [shape = 'f32[1,32]{1,0:T(1,128)}', space=vmem, size = 0x200, scoped, tag = 'scratch operand']
  #allocation3 [shape = 'f32[1,32]{1,0:T(1,128)}', space=vmem, size = 0x200, scoped, tag = 'scratch operand']
  #allocation4 [shape = 'f32[1,32]{1,0:T(1,128)}', space=vmem, size = 0x200, scoped, tag = 'scratch operand']
  #allocation5 [shape = 'f32[1,32]{1,0:T(1,128)}', space=vmem, size = 0x200, scoped, tag = 'scratch operand']
  #allocation6 [shape = 'f32[1,32]{1,0:T(1,128)}', space=vmem, size = 0x200, scoped, tag = 'scratch operand']
  %s0 = inlined_call_operand.hbm [shape: f32[8,32], index: 0, kind: input, shape index: {}]
  %s1 = inlined_call_operand.hbm [shape: f32[8,32], index: 1, kind: input, shape index: {}]
  %s2 = inlined_call_operand.hbm [shape: f32[1,32], index: 2, kind: output, shape index: {}]
  %s3 = sld [smem:[#allocation0]]
  $region34: #{tpu_custom_call.1} parent=0
    _
  %s5 = ssub.s32 1, %s3
  %s6 = scalar_select 0, %s5, %s3
  $region1: #{tpu_custom_call.1} parent=0
    #allocation7 [shape = 'u8[4096]{0}', space=vmem, size = 0x1000, scoped, tag = 'input window, operand 0, single buffered']
    #allocation8 [shape = 's32[1]{0}', space=sflag, size = 0x4, scoped, tag = 'scoped memory for tpu_custom_call.1']
    #allocation9 [shape = 's32[1]{0}', space=sflag, size = 0x4, scoped, tag = 'scoped memory for tpu_custom_call.1']
    #allocation10 [shape = 'u8[4096]{0}', space=vmem, size = 0x1000, scoped, tag = 'input window, operand 1, single buffered']
    #allocation11 [shape = 's32[1]{0}', space=sflag, size = 0x4, scoped, tag = 'scoped memory for tpu_custom_call.1']
    #allocation12 [shape = 'u8[512]{0}', space=vmem, size = 0x400, scoped, tag = 'output window, operand 0, single buffered']
    %7 = vsyncpa [#allocation8], 0
    %8 = vsyncpa [#allocation11], 0
    %9 = vsyncpa [#allocation9], 0
    // Predicated region
    $region2: #{tpu_custom_call.1} parent=1 // pred_check
      _
    $region3: #{tpu_custom_call.1} parent=1 // pred_check_branch
      %11 = sbr.rel (0) target = $region5
    $region4: #{tpu_custom_call.1} parent=1 // pred_region
      %s13 = ssub.s32 128, 128
      %14 = vsyncadd [#allocation8], %s13
      %s16 = sshll.u32 [#allocation7], 4
      %s17 = int_to_ptr.vmem [resolvable:$true] %s16
      %19 = dma.hbm_to_vmem [thread:$0]  %s0, 128, %s17, [#allocation8]
    $region5: #{tpu_custom_call.1} parent=1 // pred_fallthru
      _
    // Predicated region
    $region6: #{tpu_custom_call.1} parent=1 // pred_check
      _
    $region7: #{tpu_custom_call.1} parent=1 // pred_check_branch
      %21 = sbr.rel (0) target = $region9
    $region8: #{tpu_custom_call.1} parent=1 // pred_region
      %s23 = ssub.s32 128, 128
      %24 = vsyncadd [#allocation11], %s23
      %s26 = sshll.u32 [#allocation10], 4
      %s27 = int_to_ptr.vmem [resolvable:$true] %s26
      %29 = dma.hbm_to_vmem [thread:$0]  %s1, 128, %s27, [#allocation11]
    $region9: #{tpu_custom_call.1} parent=1 // pred_fallthru
      _
    // Predicated region
    $region10: #{tpu_custom_call.1} parent=1 // pred_check
      _
    $region11: #{tpu_custom_call.1} parent=1 // pred_check_branch
      %31 = sbr.rel (0) target = $region13
    $region12: #{tpu_custom_call.1} parent=1 // pred_region
      %32 = dma.done [#allocation8], 128
    $region13: #{tpu_custom_call.1} parent=1 // pred_fallthru
      _
    // Predicated region
    $region14: #{tpu_custom_call.1} parent=1 // pred_check
      _
    $region15: #{tpu_custom_call.1} parent=1 // pred_check_branch
      %34 = sbr.rel (0) target = $region17
    $region16: #{tpu_custom_call.1} parent=1 // pred_region
      %35 = dma.done [#allocation11], 128
    $region17: #{tpu_custom_call.1} parent=1 // pred_fallthru
      _
    %p36 = scmp.eq.s32.totalorder 0, 0
    // Predicated region
    $region18: #{tpu_custom_call.1} parent=1 // pred_check
      %p37 = pneg %p36
    $region19: #{tpu_custom_call.1} parent=1 // pred_check_branch
      %39 = sbr.rel (%p37) target = $region21
    $region20: #{tpu_custom_call.1} parent=1 // pred_region
      %vm40 = vcmask 253952
      %41 = vst.msk [vmem:[#allocation2] sm:$0x1] %vm40, 0.0
      %42 = vst.msk [vmem:[#allocation3] sm:$0x1] %vm40, 0.0
      %43 = vst.msk [vmem:[#allocation4] sm:$0x1] %vm40, 0.0
      %44 = vst.msk [vmem:[#allocation5] sm:$0x1] %vm40, 0.0
      %45 = vst.msk [vmem:[#allocation6] sm:$0x1] %vm40, 0.0
    $region21: #{tpu_custom_call.1} parent=1 // pred_fallthru
      _
    %v46 = vld [vmem:[#allocation7] sm:$0xff]
    %v47 = vld [vmem:[#allocation10] sm:$0xff]
    %v48 = vld [vmem:[#allocation2] sm:$0x1]
    %vm49 = vcmask 261120
    %v50 = vsel %vm49, %v46, 0.0
    %v51 = vrot.slane %v50, 4
    %v52 = vadd.f32 %v50, %v51
    %v53 = vrot.slane %v52, 2
    %v54 = vadd.f32 %v52, %v53
    %v55 = vrot.slane %v54, 1
    %v56 = vadd.f32 %v54, %v55
    %v57 = vadd.f32 %v48, %v56
    %vm58 = vcmask 253952
    %59 = vst.msk [vmem:[#allocation2] sm:$0x1] %vm58, %v57
    %v60 = vld [vmem:[#allocation3] sm:$0x1]
    %v61 = vsel %vm49, %v47, 0.0
    %v62 = vrot.slane %v61, 4
    %v63 = vadd.f32 %v61, %v62
    %v64 = vrot.slane %v63, 2
    %v65 = vadd.f32 %v63, %v64
    %v66 = vrot.slane %v65, 1
    %v67 = vadd.f32 %v65, %v66
    %v68 = vadd.f32 %v60, %v67
    %69 = vst.msk [vmem:[#allocation3] sm:$0x1] %vm58, %v68
    %v70 = vld [vmem:[#allocation4] sm:$0x1]
    %v71 = vmul.f32 %v46, %v46
    %v72 = vsel %vm49, %v71, 0.0
    %v73 = vrot.slane %v72, 4
    %v74 = vadd.f32 %v72, %v73
    %v75 = vrot.slane %v74, 2
    %v76 = vadd.f32 %v74, %v75
    %v77 = vrot.slane %v76, 1
    %v78 = vadd.f32 %v76, %v77
    %v79 = vadd.f32 %v70, %v78
    %80 = vst.msk [vmem:[#allocation4] sm:$0x1] %vm58, %v79
    %v81 = vld [vmem:[#allocation5] sm:$0x1]
    %v82 = vmul.f32 %v47, %v47
    %v83 = vsel %vm49, %v82, 0.0
    %v84 = vrot.slane %v83, 4
    %v85 = vadd.f32 %v83, %v84
    %v86 = vrot.slane %v85, 2
    %v87 = vadd.f32 %v85, %v86
    %v88 = vrot.slane %v87, 1
    %v89 = vadd.f32 %v87, %v88
    %v90 = vadd.f32 %v81, %v89
    %91 = vst.msk [vmem:[#allocation5] sm:$0x1] %vm58, %v90
    %v92 = vld [vmem:[#allocation6] sm:$0x1]
    %v93 = vmul.f32 %v46, %v47
    %v94 = vsel %vm49, %v93, 0.0
    %v95 = vrot.slane %v94, 4
    %v96 = vadd.f32 %v94, %v95
    %v97 = vrot.slane %v96, 2
    %v98 = vadd.f32 %v96, %v97
    %v99 = vrot.slane %v98, 1
    %v100 = vadd.f32 %v98, %v99
    %v101 = vadd.f32 %v92, %v100
    %102 = vst.msk [vmem:[#allocation6] sm:$0x1] %vm58, %v101
    // Predicated region
    $region22: #{tpu_custom_call.1} parent=1 // pred_check
      %p103 = pneg %p36
    $region23: #{tpu_custom_call.1} parent=1 // pred_check_branch
      %105 = sbr.rel (%p103) target = $region25
    $region24: #{tpu_custom_call.1} parent=1 // pred_region
      %v106 = vld [vmem:[#allocation2] sm:$0x1]
      %v107 = vld [vmem:[#allocation3] sm:$0x1]
      %v108 = vld [vmem:[#allocation6] sm:$0x1]
      %v109 = vmul.f32 %v106, %v107
      %v110 = vmul.f32 %v109, 0.125
      %v111 = vsub.f32 %v108, %v110
      %v112 = vld [vmem:[#allocation4] sm:$0x1]
      %v113 = vmul.f32 %v106, %v106
      %v114 = vmul.f32 %v113, 0.125
      %v115 = vsub.f32 %v112, %v114
      %v116 = vld [vmem:[#allocation5] sm:$0x1]
      %v117 = vmul.f32 %v107, %v107
      %v118 = vmul.f32 %v117, 0.125
      %v119 = vsub.f32 %v116, %v118
      %v120 = vmul.f32 %v115, %v119
      %v121 = vrsqrt.pop %v120
      %v122 = vmul.f32 %v120, %v121
      %vm123 = vcmp.eq.f32.partialorder %v120, inf
      %v124 = vsel %vm123, %v120, %v122
      %vm125 = vcmp.eq.f32.partialorder %v120, 0.0
      %v126 = vand.u32 %v120, 2147483648
      %v127 = vsel %vm125, %v126, %v124
      %v128 = vadd.f32 %v127, 1e-08
      %v129 = vrcp.pop %v128
      %v130 = vmul.f32 %v111, %v129
      %131 = vst.msk [vmem:[#allocation12] sm:$0x1] %vm58, %v130
    $region25: #{tpu_custom_call.1} parent=1 // pred_fallthru
      _
    // Predicated region
    $region26: #{tpu_custom_call.1} parent=1 // pred_check
      _
    $region27: #{tpu_custom_call.1} parent=1 // pred_check_branch
      %133 = sbr.rel (0) target = $region29
    $region28: #{tpu_custom_call.1} parent=1 // pred_region
      %s135 = ssub.s32 16, 16
      %136 = vsyncadd [#allocation9], %s135
      %s138 = sshll.u32 [#allocation12], 4
      %s139 = int_to_ptr.vmem [resolvable:$true] %s138
      %141 = dma.vmem_to_hbm [thread:$0]  %s139, 16, %s2, [#allocation9]
    $region29: #{tpu_custom_call.1} parent=1 // pred_fallthru
      _
    // Predicated region
    $region30: #{tpu_custom_call.1} parent=1 // pred_check
      _
    $region31: #{tpu_custom_call.1} parent=1 // pred_check_branch
      %143 = sbr.rel (0) target = $region33
    $region32: #{tpu_custom_call.1} parent=1 // pred_region
      %144 = dma.done [#allocation9], 16
    $region33: #{tpu_custom_call.1} parent=1 // pred_fallthru
      _
    %145 = vsyncpa [#allocation8], 1
    %146 = vsyncpa [#allocation11], 1
    %147 = vsyncpa [#allocation9], 1

</llo_original>
